<compile_context>
chip_gen: v6e
topology: v6e:2x2x1
jax: 0.10.0
libtpu: 0.0.40
codegen_flags: <defaults>
</compile_context>

<pallas_src>
import functools

import jax
import jax.numpy as jnp
from jax.experimental import pallas as pl
from jax.experimental.pallas import tpu as pltpu

OUT_PAD = 128  # lane-dense output width (true out_dim = 3, zero-padded)


def qnet_kernel(x_ref, w1_ref, b1_ref, w2_ref, b2_ref, w3_ref, b3_ref, o_ref):
    x = x_ref[...]                                   # (TB, 2) f32

    # fc1 + ReLU on the VPU: K=2 matmul == 2 broadcast FMAs + bias (skips an MXU
    # drain on the saturated unit).  Kept in f32 (v5e VPU has no bf16 path).
    h1 = (x[:, 0:1] * w1_ref[0:1, :]
          + x[:, 1:2] * w1_ref[1:2, :]
          + b1_ref[...])                             # (TB, 256) f32
    h1 = jnp.maximum(h1, 0.0)

    # fc2 + ReLU: bf16 MXU operands, f32 accumulate, bias/ReLU in f32 on the VPU.
    h2 = jnp.dot(h1.astype(jnp.bfloat16), w2_ref[...],
                 preferred_element_type=jnp.float32) + b2_ref[...]
    h2 = jnp.maximum(h2, 0.0)

    # fc3 (output zero-padded to 128 lanes -> unmasked full-width vreg stores).
    o_ref[...] = (jnp.dot(h2.astype(jnp.bfloat16), w3_ref[...],
                          preferred_element_type=jnp.float32)
                  + b3_ref[...]).astype(o_ref.dtype)


def _round_up(a, m):
    return (a + m - 1) // m * m


def prepare_params(params):
    """One-time prep: pad fc3 to 128 output lanes and pre-cast MXU weights to bf16.

    Done once at init so the per-call path never re-materializes padded/cast
    weights (for RL-sized batches those XLA pads can cost as much as the kernel).
    """
    w1, b1, w2, b2, w3, b3 = params
    out_dim = w3.shape[1]
    w3p = jnp.pad(w3, ((0, 0), (0, OUT_PAD - out_dim)))      # zero cols -> exact math
    b3p = jnp.pad(b3, ((0, 0), (0, OUT_PAD - out_dim)))
    return (
        w1.astype(jnp.float32),            # fc1 stays f32 (VPU path)
        b1.astype(jnp.float32),
        w2.astype(jnp.bfloat16),           # MXU operands in bf16
        b2.astype(jnp.float32),
        w3p.astype(jnp.bfloat16),
        b3p.astype(jnp.float32),
    ), out_dim


def _choose_tb(batch):
    """Batch tile: 8-row granularity, cap 1024; >=2 grid steps once batch > 128
    so the parallel batch axis can shard across v7x's two TensorCores."""
    b8 = _round_up(batch, 8)
    if b8 <= 128:
        return b8
    return min(1024, _round_up(pl.cdiv(b8, 2), 8))


@functools.partial(jax.jit, static_argnames=("out_dim",))
def qnet_forward(x, prepped, out_dim=3):
    """Fused 3-layer MLP forward. Returns (batch, out_dim) Q-values (f32)."""
    w1, b1, w2, b2, w3p, b3p = prepped
    batch, in_dim = x.shape
    hidden = w2.shape[0]

    tb = _choose_tb(batch)
    b_pad = _round_up(batch, tb)
    if b_pad != batch:
        x = jnp.pad(x, ((0, b_pad - batch), (0, 0)))
    grid = (b_pad // tb,)

    flops = 2 * b_pad * (in_dim * hidden + hidden * hidden + hidden * OUT_PAD)
    bytes_accessed = (4 * (b_pad * in_dim + b_pad * OUT_PAD
                           + w1.size + b1.size + b2.size + b3p.size)
                      + 2 * (w2.size + w3p.size))

    out = pl.pallas_call(
        qnet_kernel,
        out_shape=jax.ShapeDtypeStruct((b_pad, OUT_PAD), jnp.float32),
        grid=grid,
        in_specs=[
            # Activations: tiled over the batch grid.
            pl.BlockSpec((tb, in_dim), lambda i: (i, 0)),
            # Weights/biases: full-array blocks, resident in VMEM across grid steps.
            pl.BlockSpec((in_dim, hidden), lambda i: (0, 0)),
            pl.BlockSpec((1, hidden), lambda i: (0, 0)),
            pl.BlockSpec((hidden, hidden), lambda i: (0, 0)),
            pl.BlockSpec((1, hidden), lambda i: (0, 0)),
            pl.BlockSpec((hidden, OUT_PAD), lambda i: (0, 0)),
            pl.BlockSpec((1, OUT_PAD), lambda i: (0, 0)),
        ],
        out_specs=pl.BlockSpec((tb, OUT_PAD), lambda i: (i, 0)),
        compiler_params=pltpu.CompilerParams(
            # Batch tiles are independent -> shard across v7x's 2 TCs.
            # VMEM: ~0.3 MiB weights + double-buffered tiles < 5 MiB even at
            # tb=1024 -> no vmem_limit_bytes tuning needed on any generation.
            dimension_semantics=("parallel",),
        ),
        cost_estimate=pl.CostEstimate(
            flops=flops, transcendentals=0, bytes_accessed=bytes_accessed),
    )(x, w1, b1, w2, b2, w3p, b3p)

    # Slice away batch padding and the zero-padded output lanes (fuses under jit).
    return out[:batch, :out_dim]


def init_params(key):
    """Deterministic synthetic parameters matching Qnet's layer shapes."""
    k1, k2, k3, k4, k5, k6 = jax.random.split(key, 6)
    # Stored as (in, out); biases kept 2D (1, out) for TPU-friendly layout.
    w1 = jax.random.normal(k1, (2, 256), jnp.float32) * 0.1
    b1 = jax.random.normal(k2, (1, 256), jnp.float32) * 0.01
    w2 = jax.random.normal(k3, (256, 256), jnp.float32) * 0.05
    b2 = jax.random.normal(k4, (1, 256), jnp.float32) * 0.01
    w3 = jax.random.normal(k5, (256, 3), jnp.float32) * 0.05
    b3 = jax.random.normal(k6, (1, 3), jnp.float32) * 0.01
    return (w1, b1, w2, b2, w3, b3)


def qnet_reference(x, params):
    """Plain-JAX f32 reference for correctness checking."""
    w1, b1, w2, b2, w3, b3 = params
    h1 = jnp.maximum(x @ w1 + b1, 0.0)
    h2 = jnp.maximum(h1 @ w2 + b2, 0.0)
    return h2 @ w3 + b3


if __name__ == "__main__":
    key = jax.random.PRNGKey(0)
    pkey, xkey = jax.random.split(key)

    params = init_params(pkey)
    prepped, out_dim = prepare_params(params)

    # MountainCar observation has 2 features; small batch of 8.
    x = jax.random.normal(xkey, (8, 2), jnp.float32)
    out = jax.block_until_ready(qnet_forward(x, prepped, out_dim=out_dim))
    ref = qnet_reference(x, params)
    assert out.shape == (8, 3), out.shape
    # fc2/fc3 use bf16 MXU operands -> compare against f32 ref with loose tol.
    assert jnp.allclose(out, ref, atol=5e-3, rtol=5e-2), "mismatch vs reference"

    # Larger, non-tile-aligned batch: exercises padding + the >=2-step grid path.
    xkey2 = jax.random.fold_in(xkey, 1)
    x_big = jax.random.normal(xkey2, (300, 2), jnp.float32)
    out_big = jax.block_until_ready(qnet_forward(x_big, prepped, out_dim=out_dim))
    ref_big = qnet_reference(x_big, params)
    assert out_big.shape == (300, 3), out_big.shape
    assert jnp.allclose(out_big, ref_big, atol=5e-3, rtol=5e-2), "mismatch (big batch)"

    print("KERNEL_OK")
</pallas_src>

<mosaic_0001>
module attributes {stable_mosaic.version = 11 : i64} {
  func.func @qnet_kernel(%arg0: i32, %arg1: memref<8x2xf32, #tpu.memory_space<vmem>>, %arg2: memref<2x256xf32, #tpu.memory_space<vmem>>, %arg3: memref<1x256xf32, #tpu.memory_space<vmem>>, %arg4: memref<256x256xbf16, #tpu.memory_space<vmem>>, %arg5: memref<1x256xf32, #tpu.memory_space<vmem>>, %arg6: memref<256x128xbf16, #tpu.memory_space<vmem>>, %arg7: memref<1x128xf32, #tpu.memory_space<vmem>>, %arg8: memref<8x128xf32, #tpu.memory_space<vmem>>) attributes {dimension_semantics = [#tpu.dimension_semantics<parallel>], iteration_bounds = array<i64: 1>, scalar_prefetch = 0 : i64, scratch_operands = 0 : i64, tpu.core_type = #tpu.core_type<tc>, window_params = [{transform_indices = @transform_0, window_bounds = array<i64: 8, 2>}, {pipeline_mode = #tpu.pipeline_mode<synchronous>, transform_indices = @transform_1, window_bounds = array<i64: 2, 256>}, {pipeline_mode = #tpu.pipeline_mode<synchronous>, transform_indices = @transform_2, window_bounds = array<i64: 1, 256>}, {pipeline_mode = #tpu.pipeline_mode<synchronous>, transform_indices = @transform_3, window_bounds = array<i64: 256, 256>}, {pipeline_mode = #tpu.pipeline_mode<synchronous>, transform_indices = @transform_4, window_bounds = array<i64: 1, 256>}, {pipeline_mode = #tpu.pipeline_mode<synchronous>, transform_indices = @transform_5, window_bounds = array<i64: 256, 128>}, {pipeline_mode = #tpu.pipeline_mode<synchronous>, transform_indices = @transform_6, window_bounds = array<i64: 1, 128>}, {transform_indices = @transform_7, window_bounds = array<i64: 8, 128>}]} {
    %c0 = arith.constant 0 : index
    %c0_0 = arith.constant 0 : index
    %0 = vector.load %arg1[%c0, %c0_0] : memref<8x2xf32, #tpu.memory_space<vmem>>, vector<8x2xf32>
    %1 = vector.extract_strided_slice %0 {offsets = [0, 0], sizes = [8, 1], strides = [1, 1]} : vector<8x2xf32> to vector<8x1xf32>
    %c0_1 = arith.constant 0 : index
    %c0_2 = arith.constant 0 : index
    %2 = vector.load %arg2[%c0_1, %c0_2] : memref<2x256xf32, #tpu.memory_space<vmem>>, vector<1x256xf32>
    %3 = vector.broadcast %1 : vector<8x1xf32> to vector<8x256xf32>
    %4 = vector.broadcast %2 : vector<1x256xf32> to vector<8x256xf32>
    %5 = arith.mulf %3, %4 : vector<8x256xf32>
    %6 = vector.extract_strided_slice %0 {offsets = [0, 1], sizes = [8, 1], strides = [1, 1]} : vector<8x2xf32> to vector<8x1xf32>
    %c1 = arith.constant 1 : index
    %c0_3 = arith.constant 0 : index
    %7 = vector.load %arg2[%c1, %c0_3] : memref<2x256xf32, #tpu.memory_space<vmem>>, vector<1x256xf32>
    %8 = vector.broadcast %6 : vector<8x1xf32> to vector<8x256xf32>
    %9 = vector.broadcast %7 : vector<1x256xf32> to vector<8x256xf32>
    %10 = arith.mulf %8, %9 : vector<8x256xf32>
    %11 = arith.addf %5, %10 : vector<8x256xf32>
    %c0_4 = arith.constant 0 : index
    %c0_5 = arith.constant 0 : index
    %12 = vector.load %arg3[%c0_4, %c0_5] : memref<1x256xf32, #tpu.memory_space<vmem>>, vector<1x256xf32>
    %13 = vector.broadcast %12 : vector<1x256xf32> to vector<8x256xf32>
    %14 = arith.addf %11, %13 : vector<8x256xf32>
    %cst = arith.constant 0.000000e+00 : f32
    %15 = vector.broadcast %cst : f32 to vector<8x256xf32>
    %16 = arith.maximumf %14, %15 : vector<8x256xf32>
    %17 = arith.truncf %16 : vector<8x256xf32> to vector<8x256xbf16>
    %c0_6 = arith.constant 0 : index
    %c0_7 = arith.constant 0 : index
    %18 = vector.load %arg4[%c0_6, %c0_7] : memref<256x256xbf16, #tpu.memory_space<vmem>>, vector<256x256xbf16>
    %cst_8 = arith.constant dense<0.000000e+00> : vector<8x256xf32>
    %19 = tpu.matmul %17, %18, %cst_8 {dimension_numbers = #tpu.dot_dimension_numbers<[1], [0], [0], [1], [0, 0, 1, 1], [], []>} : vector<8x256xbf16>, vector<256x256xbf16>, vector<8x256xf32> -> vector<8x256xf32>
    %c0_9 = arith.constant 0 : index
    %c0_10 = arith.constant 0 : index
    %20 = vector.load %arg5[%c0_9, %c0_10] : memref<1x256xf32, #tpu.memory_space<vmem>>, vector<1x256xf32>
    %21 = vector.broadcast %20 : vector<1x256xf32> to vector<8x256xf32>
    %22 = arith.addf %19, %21 : vector<8x256xf32>
    %cst_11 = arith.constant 0.000000e+00 : f32
    %23 = vector.broadcast %cst_11 : f32 to vector<8x256xf32>
    %24 = arith.maximumf %22, %23 : vector<8x256xf32>
    %25 = arith.truncf %24 : vector<8x256xf32> to vector<8x256xbf16>
    %c0_12 = arith.constant 0 : index
    %c0_13 = arith.constant 0 : index
    %26 = vector.load %arg6[%c0_12, %c0_13] : memref<256x128xbf16, #tpu.memory_space<vmem>>, vector<256x128xbf16>
    %cst_14 = arith.constant dense<0.000000e+00> : vector<8x128xf32>
    %27 = tpu.matmul %25, %26, %cst_14 {dimension_numbers = #tpu.dot_dimension_numbers<[1], [0], [0], [1], [0, 0, 1, 1], [], []>} : vector<8x256xbf16>, vector<256x128xbf16>, vector<8x128xf32> -> vector<8x128xf32>
    %c0_15 = arith.constant 0 : index
    %c0_16 = arith.constant 0 : index
    %28 = vector.load %arg7[%c0_15, %c0_16] : memref<1x128xf32, #tpu.memory_space<vmem>>, vector<1x128xf32>
    %29 = vector.broadcast %28 : vector<1x128xf32> to vector<8x128xf32>
    %30 = arith.addf %27, %29 : vector<8x128xf32>
    %c0_17 = arith.constant 0 : index
    %c0_18 = arith.constant 0 : index
    %31 = vector.load %arg8[%c0_17, %c0_18] : memref<8x128xf32, #tpu.memory_space<vmem>>, vector<8x128xf32>
    tpu.vector_store %arg8[%c0_17, %c0_18], %30 {strides = array<i32>} : memref<8x128xf32, #tpu.memory_space<vmem>>, vector<8x128xf32>,
    return
  }
  func.func @transform_0(%arg0: i32) -> (i32, i32) {
    %c0_i32 = arith.constant 0 : i32
    %c0_i32_0 = arith.constant 0 : i32
    return %arg0, %c0_i32 : i32, i32
  }
  func.func @transform_1(%arg0: i32) -> (i32, i32) {
    %c0_i32 = arith.constant 0 : i32
    %c0_i32_0 = arith.constant 0 : i32
    %c0_i32_1 = arith.constant 0 : i32
    return %c0_i32, %c0_i32_0 : i32, i32
  }
  func.func @transform_2(%arg0: i32) -> (i32, i32) {
    %c0_i32 = arith.constant 0 : i32
    %c0_i32_0 = arith.constant 0 : i32
    %c0_i32_1 = arith.constant 0 : i32
    return %c0_i32, %c0_i32_0 : i32, i32
  }
  func.func @transform_3(%arg0: i32) -> (i32, i32) {
    %c0_i32 = arith.constant 0 : i32
    %c0_i32_0 = arith.constant 0 : i32
    %c0_i32_1 = arith.constant 0 : i32
    return %c0_i32, %c0_i32_0 : i32, i32
  }
  func.func @transform_4(%arg0: i32) -> (i32, i32) {
    %c0_i32 = arith.constant 0 : i32
    %c0_i32_0 = arith.constant 0 : i32
    %c0_i32_1 = arith.constant 0 : i32
    return %c0_i32, %c0_i32_0 : i32, i32
  }
  func.func @transform_5(%arg0: i32) -> (i32, i32) {
    %c0_i32 = arith.constant 0 : i32
    %c0_i32_0 = arith.constant 0 : i32
    %c0_i32_1 = arith.constant 0 : i32
    return %c0_i32, %c0_i32_0 : i32, i32
  }
  func.func @transform_6(%arg0: i32) -> (i32, i32) {
    %c0_i32 = arith.constant 0 : i32
    %c0_i32_0 = arith.constant 0 : i32
    %c0_i32_1 = arith.constant 0 : i32
    return %c0_i32, %c0_i32_0 : i32, i32
  }
  func.func @transform_7(%arg0: i32) -> (i32, i32) {
    %c0_i32 = arith.constant 0 : i32
    %c0_i32_0 = arith.constant 0 : i32
    return %arg0, %c0_i32 : i32, i32
  }
}

</mosaic_0001>

<llo_original>
// kernel: qnet_forward.1
$region0: #{qnet_forward.1}
  #allocation0 [shape = 'u32[]', space=smem, size = 0x4, offset = 0x4, fixed_abs, tag = 'smem constant byte address 0x4 - core index']
  #allocation1 [shape = 'u32[144,128]{1,0:T(1,128)}', space=vmem, size = 0x12000, scoped, tag = 'internal scratch']
  %s0 = inlined_call_operand.vmem [shape: f32[8,2], index: 0, kind: input, shape index: {}]
  %s1 = inlined_call_operand.vmem [shape: f32[2,256], index: 1, kind: input, shape index: {}]
  %s2 = inlined_call_operand.vmem [shape: f32[1,256], index: 2, kind: input, shape index: {}]
  %s3 = inlined_call_operand.hbm [shape: bf16[256,256], index: 3, kind: input, shape index: {}]
  %s4 = inlined_call_operand.vmem [shape: f32[1,256], index: 4, kind: input, shape index: {}]
  %s5 = inlined_call_operand.hbm [shape: bf16[256,128], index: 5, kind: input, shape index: {}]
  %s6 = inlined_call_operand.vmem [shape: f32[1,128], index: 6, kind: input, shape index: {}]
  %s7 = inlined_call_operand.vmem [shape: f32[8,128], index: 7, kind: output, shape index: {}]
  %s8 = sld [smem:[#allocation0]]
  $region46: #{qnet_forward.1} parent=0
    _
  %s10 = ssub.s32 1, %s8
  %s11 = scalar_select 0, %s10, %s8
  $region1: #{qnet_forward.1} parent=0
    #allocation2 [shape = 'u8[131072]{0}', space=vmem, size = 0x20000, scoped, tag = 'input window, operand 3, single buffered']
    #allocation3 [shape = 's32[1]{0}', space=sflag, size = 0x4, scoped, tag = 'scoped memory for qnet_forward.1']
    #allocation4 [shape = 'u8[65536]{0}', space=vmem, size = 0x10000, scoped, tag = 'input window, operand 5, single buffered']
    #allocation5 [shape = 's32[1]{0}', space=sflag, size = 0x4, scoped, tag = 'scoped memory for qnet_forward.1']
    %12 = vsyncpa [#allocation3], 0
    %13 = vsyncpa [#allocation5], 0
    // Predicated region
    $region2: #{qnet_forward.1} parent=1 // pred_check
      _
    $region3: #{qnet_forward.1} parent=1 // pred_check_branch
      %15 = sbr.rel (0) target = $region5
    $region4: #{qnet_forward.1} parent=1 // pred_region
      _
    $region5: #{qnet_forward.1} parent=1 // pred_fallthru
      _
    // Predicated region
    $region6: #{qnet_forward.1} parent=1 // pred_check
      _
    $region7: #{qnet_forward.1} parent=1 // pred_check_branch
      %17 = sbr.rel (0) target = $region9
    $region8: #{qnet_forward.1} parent=1 // pred_region
      _
    $region9: #{qnet_forward.1} parent=1 // pred_fallthru
      _
    // Predicated region
    $region10: #{qnet_forward.1} parent=1 // pred_check
      _
    $region11: #{qnet_forward.1} parent=1 // pred_check_branch
      %19 = sbr.rel (0) target = $region13
    $region12: #{qnet_forward.1} parent=1 // pred_region
      _
    $region13: #{qnet_forward.1} parent=1 // pred_fallthru
      _
    // Predicated region
    $region14: #{qnet_forward.1} parent=1 // pred_check
      _
    $region15: #{qnet_forward.1} parent=1 // pred_check_branch
      %21 = sbr.rel (0) target = $region17
    $region16: #{qnet_forward.1} parent=1 // pred_region
      %s23 = ssub.s32 4096, 4096
      %24 = vsyncadd [#allocation3], %s23
      %s25 = sshll.u32 [#allocation2], 4
      %s26 = int_to_ptr.vmem [resolvable:$true] %s25
      %31 = dma.hbm_to_vmem [thread:$0]  %s3, 4096, %s26, [#allocation3], 128, 128, 8
    $region17: #{qnet_forward.1} parent=1 // pred_fallthru
      _
    // Predicated region
    $region18: #{qnet_forward.1} parent=1 // pred_check
      _
    $region19: #{qnet_forward.1} parent=1 // pred_check_branch
      %33 = sbr.rel (0) target = $region21
    $region20: #{qnet_forward.1} parent=1 // pred_region
      _
    $region21: #{qnet_forward.1} parent=1 // pred_fallthru
      _
    // Predicated region
    $region22: #{qnet_forward.1} parent=1 // pred_check
      _
    $region23: #{qnet_forward.1} parent=1 // pred_check_branch
      %35 = sbr.rel (0) target = $region25
    $region24: #{qnet_forward.1} parent=1 // pred_region
      %s37 = ssub.s32 2048, 2048
      %38 = vsyncadd [#allocation5], %s37
      %s39 = sshll.u32 [#allocation4], 4
      %s40 = int_to_ptr.vmem [resolvable:$true] %s39
      %45 = dma.hbm_to_vmem [thread:$0]  %s5, 2048, %s40, [#allocation5], 64, 64, 4
    $region25: #{qnet_forward.1} parent=1 // pred_fallthru
      _
    // Predicated region
    $region26: #{qnet_forward.1} parent=1 // pred_check
      _
    $region27: #{qnet_forward.1} parent=1 // pred_check_branch
      %47 = sbr.rel (0) target = $region29
    $region28: #{qnet_forward.1} parent=1 // pred_region
      _
    $region29: #{qnet_forward.1} parent=1 // pred_fallthru
      _
    // Predicated region
    $region30: #{qnet_forward.1} parent=1 // pred_check
      _
    $region31: #{qnet_forward.1} parent=1 // pred_check_branch
      %49 = sbr.rel (0) target = $region33
    $region32: #{qnet_forward.1} parent=1 // pred_region
      %50 = dma.done [#allocation3], 4096
    $region33: #{qnet_forward.1} parent=1 // pred_fallthru
      _
    // Predicated region
    $region34: #{qnet_forward.1} parent=1 // pred_check
      _
    $region35: #{qnet_forward.1} parent=1 // pred_check_branch
      %52 = sbr.rel (0) target = $region37
    $region36: #{qnet_forward.1} parent=1 // pred_region
      %53 = dma.done [#allocation5], 2048
    $region37: #{qnet_forward.1} parent=1 // pred_fallthru
      _
    %v55 = vld [vmem:[%s0] sm:$0xff]
    %v56 = vld [vmem:[%s1] ss:$2 sm:$0x3]
    %58 = vset.pattern.permute.xlu0 0
    %59 = vperm.xlu0 %58, %v55
    %v60 = vpop.permute.xlu0 %59
    %v63 = vlaneseq
    %v64 = vshrl.u32 %v63, 7
    %v65 = vsub.s32 0, %v64
    %v66 = vrot.slane %v56, %v65
    %v67 = vlaneseq
    %v68 = vshrl.u32 %v67, 7
    %v69 = vsub.s32 1, %v68
    %v70 = vrot.slane %v56, %v69
    %v73 = vmul.f32 %v60, %v66
    %v74 = vmul.f32 %v60, %v70
    %s75 = scalar_lea.vmem %s1, 1
    %v76 = vld [vmem:[%s75] ss:$2 sm:$0x3]
    %77 = vset.pattern.permute.xlu0 1
    %78 = vperm.xlu0 %77, %v55
    %v79 = vpop.permute.xlu0 %78
    %v82 = vlaneseq
    %v83 = vshrl.u32 %v82, 7
    %v84 = vsub.s32 0, %v83
    %v85 = vrot.slane %v76, %v84
    %v86 = vlaneseq
    %v87 = vshrl.u32 %v86, 7
    %v88 = vsub.s32 1, %v87
    %v89 = vrot.slane %v76, %v88
    %v92 = vmul.f32 %v79, %v85
    %v93 = vmul.f32 %v79, %v89
    %v94 = vadd.f32 %v73, %v92
    %v95 = vadd.f32 %v74, %v93
    %v96 = vld [vmem:[%s2] sm:$0x3]
    %v98 = vlaneseq
    %v99 = vshrl.u32 %v98, 7
    %v100 = vsub.s32 0, %v99
    %v101 = vrot.slane %v96, %v100
    %v102 = vlaneseq
    %v103 = vshrl.u32 %v102, 7
    %v104 = vsub.s32 1, %v103
    %v105 = vrot.slane %v96, %v104
    %v108 = vadd.f32 %v94, %v101
    %v109 = vadd.f32 %v95, %v105
    %v110 = vmax.f32 %v108, 0.0
    %v111 = vmax.f32 %v109, 0.0
    %v112 = vpack.c.bf16 %v110, %v110
    %v113 = vpack.c.bf16 %v111, %v111
    %v114 = vld [vmem:[#allocation2] sm:$0xff]
    %v115 = vld [vmem:[#allocation2 + $0x8] sm:$0xff]
    %v116 = vld [vmem:[#allocation2 + $0x10] sm:$0xff]
    %v117 = vld [vmem:[#allocation2 + $0x18] sm:$0xff]
    %v118 = vld [vmem:[#allocation2 + $0x20] sm:$0xff]
    %v119 = vld [vmem:[#allocation2 + $0x28] sm:$0xff]
    %v120 = vld [vmem:[#allocation2 + $0x30] sm:$0xff]
    %v121 = vld [vmem:[#allocation2 + $0x38] sm:$0xff]
    %v122 = vld [vmem:[#allocation2 + $0x40] sm:$0xff]
    %v123 = vld [vmem:[#allocation2 + $0x48] sm:$0xff]
    %v124 = vld [vmem:[#allocation2 + $0x50] sm:$0xff]
    %v125 = vld [vmem:[#allocation2 + $0x58] sm:$0xff]
    %v126 = vld [vmem:[#allocation2 + $0x60] sm:$0xff]
    %v127 = vld [vmem:[#allocation2 + $0x68] sm:$0xff]
    %v128 = vld [vmem:[#allocation2 + $0x70] sm:$0xff]
    %v129 = vld [vmem:[#allocation2 + $0x78] sm:$0xff]
    %v130 = vld [vmem:[#allocation2 + $0x80] sm:$0xff]
    %v131 = vld [vmem:[#allocation2 + $0x88] sm:$0xff]
    %v132 = vld [vmem:[#allocation2 + $0x90] sm:$0xff]
    %v133 = vld [vmem:[#allocation2 + $0x98] sm:$0xff]
    %v134 = vld [vmem:[#allocation2 + $0xa0] sm:$0xff]
    %v135 = vld [vmem:[#allocation2 + $0xa8] sm:$0xff]
    %v136 = vld [vmem:[#allocation2 + $0xb0] sm:$0xff]
    %v137 = vld [vmem:[#allocation2 + $0xb8] sm:$0xff]
    %v138 = vld [vmem:[#allocation2 + $0xc0] sm:$0xff]
    %v139 = vld [vmem:[#allocation2 + $0xc8] sm:$0xff]
    %v140 = vld [vmem:[#allocation2 + $0xd0] sm:$0xff]
    %v141 = vld [vmem:[#allocation2 + $0xd8] sm:$0xff]
    %v142 = vld [vmem:[#allocation2 + $0xe0] sm:$0xff]
    %v143 = vld [vmem:[#allocation2 + $0xe8] sm:$0xff]
    %v144 = vld [vmem:[#allocation2 + $0xf0] sm:$0xff]
    %v145 = vld [vmem:[#allocation2 + $0xf8] sm:$0xff]
    %v146 = vld [vmem:[%s4] sm:$0x3]
    %v148 = vlaneseq
    %v149 = vshrl.u32 %v148, 7
    %v150 = vsub.s32 0, %v149
    %v151 = vrot.slane %v146, %v150
    %v152 = vlaneseq
    %v153 = vshrl.u32 %v152, 7
    %v154 = vsub.s32 1, %v153
    %v155 = vrot.slane %v146, %v154
    %v190 = vunpack.c.l.b16 %v114
    %v191 = vunpack.c.h.b16 %v114
    %v192 = vunpack.c.l.b16 %v115
    %v193 = vunpack.c.h.b16 %v115
    %v194 = vunpack.c.l.b16 %v116
    %v195 = vunpack.c.h.b16 %v116
    %v196 = vunpack.c.l.b16 %v117
    %v197 = vunpack.c.h.b16 %v117
    %v198 = vunpack.c.l.b16 %v118
    %v199 = vunpack.c.h.b16 %v118
    %v200 = vunpack.c.l.b16 %v119
    %v201 = vunpack.c.h.b16 %v119
    %v202 = vunpack.c.l.b16 %v120
    %v203 = vunpack.c.h.b16 %v120
    %v204 = vunpack.c.l.b16 %v121
    %v205 = vunpack.c.h.b16 %v121
    %v206 = vunpack.c.l.b16 %v122
    %v207 = vunpack.c.h.b16 %v122
    %v208 = vunpack.c.l.b16 %v123
    %v209 = vunpack.c.h.b16 %v123
    %v210 = vunpack.c.l.b16 %v124
    %v211 = vunpack.c.h.b16 %v124
    %v212 = vunpack.c.l.b16 %v125
    %v213 = vunpack.c.h.b16 %v125
    %v214 = vunpack.c.l.b16 %v126
    %v215 = vunpack.c.h.b16 %v126
    %v216 = vunpack.c.l.b16 %v127
    %v217 = vunpack.c.h.b16 %v127
    %v218 = vunpack.c.l.b16 %v128
    %v219 = vunpack.c.h.b16 %v128
    %v220 = vunpack.c.l.b16 %v129
    %v221 = vunpack.c.h.b16 %v129
    %v222 = vunpack.c.l.b16 %v130
    %v223 = vunpack.c.h.b16 %v130
    %v224 = vunpack.c.l.b16 %v131
    %v225 = vunpack.c.h.b16 %v131
    %v226 = vunpack.c.l.b16 %v132
    %v227 = vunpack.c.h.b16 %v132
    %v228 = vunpack.c.l.b16 %v133
    %v229 = vunpack.c.h.b16 %v133
    %v230 = vunpack.c.l.b16 %v134
    %v231 = vunpack.c.h.b16 %v134
    %v232 = vunpack.c.l.b16 %v135
    %v233 = vunpack.c.h.b16 %v135
    %v234 = vunpack.c.l.b16 %v136
    %v235 = vunpack.c.h.b16 %v136
    %v236 = vunpack.c.l.b16 %v137
    %v237 = vunpack.c.h.b16 %v137
    %v238 = vunpack.c.l.b16 %v138
    %v239 = vunpack.c.h.b16 %v138
    %v240 = vunpack.c.l.b16 %v139
    %v241 = vunpack.c.h.b16 %v139
    %v242 = vunpack.c.l.b16 %v140
    %v243 = vunpack.c.h.b16 %v140
    %v244 = vunpack.c.l.b16 %v141
    %v245 = vunpack.c.h.b16 %v141
    %v246 = vunpack.c.l.b16 %v142
    %v247 = vunpack.c.h.b16 %v142
    %v248 = vunpack.c.l.b16 %v143
    %v249 = vunpack.c.h.b16 %v143
    %v250 = vunpack.c.l.b16 %v144
    %v251 = vunpack.c.h.b16 %v144
    %v252 = vunpack.c.l.b16 %v145
    %v253 = vunpack.c.h.b16 %v145
    %v254 = vpack.c.b16 %v192, %v190
    %v255 = vpack.c.b16 %v193, %v191
    %v256 = vpack.c.b16 %v196, %v194
    %v257 = vpack.c.b16 %v197, %v195
    %v258 = vpack.c.b16 %v200, %v198
    %v259 = vpack.c.b16 %v201, %v199
    %v260 = vpack.c.b16 %v204, %v202
    %v261 = vpack.c.b16 %v205, %v203
    %v262 = vpack.c.b16 %v208, %v206
    %v263 = vpack.c.b16 %v209, %v207
    %v264 = vpack.c.b16 %v212, %v210
    %v265 = vpack.c.b16 %v213, %v211
    %v266 = vpack.c.b16 %v216, %v214
    %v267 = vpack.c.b16 %v217, %v215
    %v268 = vpack.c.b16 %v220, %v218
    %v269 = vpack.c.b16 %v221, %v219
    %v270 = vpack.c.b16 %v224, %v222
    %v271 = vpack.c.b16 %v225, %v223
    %v272 = vpack.c.b16 %v228, %v226
    %v273 = vpack.c.b16 %v229, %v227
    %v274 = vpack.c.b16 %v232, %v230
    %v275 = vpack.c.b16 %v233, %v231
    %v276 = vpack.c.b16 %v236, %v234
    %v277 = vpack.c.b16 %v237, %v235
    %v278 = vpack.c.b16 %v240, %v238
    %v279 = vpack.c.b16 %v241, %v239
    %v280 = vpack.c.b16 %v244, %v242
    %v281 = vpack.c.b16 %v245, %v243
    %v282 = vpack.c.b16 %v248, %v246
    %v283 = vpack.c.b16 %v249, %v247
    %v284 = vpack.c.b16 %v252, %v250
    %v285 = vpack.c.b16 %v253, %v251
    %318 = vmatprep.subr.bf16.mxu0 %v269
    %319 = vmatpush1.bf16.msra.mxu0 %v268
    %320 = vmatprep.subr.bf16.mxu0 %v267
    %321 = vmatpush1.bf16.msra.mxu0 %v266
    %322 = vmatprep.subr.bf16.mxu0 %v265
    %323 = vmatpush1.bf16.msra.mxu0 %v264
    %324 = vmatprep.subr.bf16.mxu0 %v263
    %325 = vmatpush1.bf16.msra.mxu0 %v262
    %326 = vmatprep.subr.bf16.mxu0 %v261
    %327 = vmatpush1.bf16.msra.mxu0 %v260
    %328 = vmatprep.subr.bf16.mxu0 %v259
    %329 = vmatpush1.bf16.msra.mxu0 %v258
    %330 = vmatprep.subr.bf16.mxu0 %v257
    %331 = vmatpush1.bf16.msra.mxu0 %v256
    %332 = vmatprep.subr.bf16.mxu0 %v255
    %333 = vmatpush1.bf16.msra.mxu0 %v254
    %334 = vmatprep.subr.bf16.mxu0 %v285
    %335 = vmatpush2.bf16.msra.mxu0 %v284
    %336 = vmatprep.subr.bf16.mxu0 %v283
    %337 = vmatpush2.bf16.msra.mxu0 %v282
    %338 = vmatprep.subr.bf16.mxu0 %v281
    %339 = vmatpush2.bf16.msra.mxu0 %v280
    %340 = vmatprep.subr.bf16.mxu0 %v279
    %341 = vmatpush2.bf16.msra.mxu0 %v278
    %342 = vmatprep.subr.bf16.mxu0 %v277
    %343 = vmatpush2.bf16.msra.mxu0 %v276
    %344 = vmatprep.subr.bf16.mxu0 %v275
    %345 = vmatpush2.bf16.msra.mxu0 %v274
    %346 = vmatprep.subr.bf16.mxu0 %v273
    %347 = vmatpush2.bf16.msra.mxu0 %v272
    %348 = vmatprep.subr.bf16.mxu0 %v271
    %349 = vmatpush2.bf16.msra.mxu0 %v270
    %350 = vmatprep.mubr.bf16.mxu0 %v113
    %351 = vmatmul.mubr.bf16.gmra.mxu0 %v112
    %v352 = vpop.f32.mrf.mxu0
    %v353 = vadd.f32 %v151, %v352
    %v354 = vpop.f32.mrf.mxu0
    %v355 = vadd.f32 %v155, %v354
    %v356 = vpop.f32.mrf.mxu0
    %v357 = vpop.f32.mrf.mxu0
    %358 = vdwg.mxu0
    %v359 = vmax.f32 %v353, 0.0
    %v360 = vmax.f32 %v355, 0.0
    %v361 = vpack.c.bf16 %v359, %v359
    %v362 = vpack.c.bf16 %v360, %v360
    %v363 = vld [vmem:[#allocation4] sm:$0xf]
    %v364 = vld [vmem:[#allocation4 + $0x4] sm:$0xf]
    %v365 = vld [vmem:[#allocation4 + $0x8] sm:$0xf]
    %v366 = vld [vmem:[#allocation4 + $0xc] sm:$0xf]
    %v367 = vld [vmem:[#allocation4 + $0x10] sm:$0xf]
    %v368 = vld [vmem:[#allocation4 + $0x14] sm:$0xf]
    %v369 = vld [vmem:[#allocation4 + $0x18] sm:$0xf]
    %v370 = vld [vmem:[#allocation4 + $0x1c] sm:$0xf]
    %v371 = vld [vmem:[#allocation4 + $0x20] sm:$0xf]
    %v372 = vld [vmem:[#allocation4 + $0x24] sm:$0xf]
    %v373 = vld [vmem:[#allocation4 + $0x28] sm:$0xf]
    %v374 = vld [vmem:[#allocation4 + $0x2c] sm:$0xf]
    %v375 = vld [vmem:[#allocation4 + $0x30] sm:$0xf]
    %v376 = vld [vmem:[#allocation4 + $0x34] sm:$0xf]
    %v377 = vld [vmem:[#allocation4 + $0x38] sm:$0xf]
    %v378 = vld [vmem:[#allocation4 + $0x3c] sm:$0xf]
    %v379 = vld [vmem:[#allocation4 + $0x40] sm:$0xf]
    %v380 = vld [vmem:[#allocation4 + $0x44] sm:$0xf]
    %v381 = vld [vmem:[#allocation4 + $0x48] sm:$0xf]
    %v382 = vld [vmem:[#allocation4 + $0x4c] sm:$0xf]
    %v383 = vld [vmem:[#allocation4 + $0x50] sm:$0xf]
    %v384 = vld [vmem:[#allocation4 + $0x54] sm:$0xf]
    %v385 = vld [vmem:[#allocation4 + $0x58] sm:$0xf]
    %v386 = vld [vmem:[#allocation4 + $0x5c] sm:$0xf]
    %v387 = vld [vmem:[#allocation4 + $0x60] sm:$0xf]
    %v388 = vld [vmem:[#allocation4 + $0x64] sm:$0xf]
    %v389 = vld [vmem:[#allocation4 + $0x68] sm:$0xf]
    %v390 = vld [vmem:[#allocation4 + $0x6c] sm:$0xf]
    %v391 = vld [vmem:[#allocation4 + $0x70] sm:$0xf]
    %v392 = vld [vmem:[#allocation4 + $0x74] sm:$0xf]
    %v393 = vld [vmem:[#allocation4 + $0x78] sm:$0xf]
    %v394 = vld [vmem:[#allocation4 + $0x7c] sm:$0xf]
    %v395 = vld [vmem:[%s6] sm:$0x1]
    %v397 = vlaneseq
    %v398 = vshrl.u32 %v397, 7
    %v399 = vsub.s32 0, %v398
    %v400 = vrot.slane %v395, %v399
    %v434 = vunpack.c.l.b16 %v363
    %v435 = vunpack.c.l.b16 %v364
    %v436 = vunpack.c.l.b16 %v365
    %v437 = vunpack.c.l.b16 %v366
    %v438 = vunpack.c.l.b16 %v367
    %v439 = vunpack.c.l.b16 %v368
    %v440 = vunpack.c.l.b16 %v369
    %v441 = vunpack.c.l.b16 %v370
    %v442 = vunpack.c.l.b16 %v371
    %v443 = vunpack.c.l.b16 %v372
    %v444 = vunpack.c.l.b16 %v373
    %v445 = vunpack.c.l.b16 %v374
    %v446 = vunpack.c.l.b16 %v375
    %v447 = vunpack.c.l.b16 %v376
    %v448 = vunpack.c.l.b16 %v377
    %v449 = vunpack.c.l.b16 %v378
    %v450 = vunpack.c.l.b16 %v379
    %v451 = vunpack.c.l.b16 %v380
    %v452 = vunpack.c.l.b16 %v381
    %v453 = vunpack.c.l.b16 %v382
    %v454 = vunpack.c.l.b16 %v383
    %v455 = vunpack.c.l.b16 %v384
    %v456 = vunpack.c.l.b16 %v385
    %v457 = vunpack.c.l.b16 %v386
    %v458 = vunpack.c.l.b16 %v387
    %v459 = vunpack.c.l.b16 %v388
    %v460 = vunpack.c.l.b16 %v389
    %v461 = vunpack.c.l.b16 %v390
    %v462 = vunpack.c.l.b16 %v391
    %v463 = vunpack.c.l.b16 %v392
    %v464 = vunpack.c.l.b16 %v393
    %v465 = vunpack.c.l.b16 %v394
    %v466 = vpack.c.b16 %v435, %v434
    %v467 = vpack.c.b16 %v437, %v436
    %v468 = vpack.c.b16 %v439, %v438
    %v469 = vpack.c.b16 %v441, %v440
    %v470 = vpack.c.b16 %v443, %v442
    %v471 = vpack.c.b16 %v445, %v444
    %v472 = vpack.c.b16 %v447, %v446
    %v473 = vpack.c.b16 %v449, %v448
    %v474 = vpack.c.b16 %v451, %v450
    %v475 = vpack.c.b16 %v453, %v452
    %v476 = vpack.c.b16 %v455, %v454
    %v477 = vpack.c.b16 %v457, %v456
    %v478 = vpack.c.b16 %v459, %v458
    %v479 = vpack.c.b16 %v461, %v460
    %v480 = vpack.c.b16 %v463, %v462
    %v481 = vpack.c.b16 %v465, %v464
    %498 = vmatprep.subr.bf16.mxu0 0
    %499 = vmatpush1.bf16.msra.mxu0 %v473
    %500 = vmatprep.subr.bf16.mxu0 0
    %501 = vmatpush1.bf16.msra.mxu0 %v472
    %502 = vmatprep.subr.bf16.mxu0 0
    %503 = vmatpush1.bf16.msra.mxu0 %v471
    %504 = vmatprep.subr.bf16.mxu0 0
    %505 = vmatpush1.bf16.msra.mxu0 %v470
    %506 = vmatprep.subr.bf16.mxu0 0
    %507 = vmatpush1.bf16.msra.mxu0 %v469
    %508 = vmatprep.subr.bf16.mxu0 0
    %509 = vmatpush1.bf16.msra.mxu0 %v468
    %510 = vmatprep.subr.bf16.mxu0 0
    %511 = vmatpush1.bf16.msra.mxu0 %v467
    %512 = vmatprep.subr.bf16.mxu0 0
    %513 = vmatpush1.bf16.msra.mxu0 %v466
    %514 = vmatprep.subr.bf16.mxu0 0
    %515 = vmatpush2.bf16.msra.mxu0 %v481
    %516 = vmatprep.subr.bf16.mxu0 0
    %517 = vmatpush2.bf16.msra.mxu0 %v480
    %518 = vmatprep.subr.bf16.mxu0 0
    %519 = vmatpush2.bf16.msra.mxu0 %v479
    %520 = vmatprep.subr.bf16.mxu0 0
    %521 = vmatpush2.bf16.msra.mxu0 %v478
    %522 = vmatprep.subr.bf16.mxu0 0
    %523 = vmatpush2.bf16.msra.mxu0 %v477
    %524 = vmatprep.subr.bf16.mxu0 0
    %525 = vmatpush2.bf16.msra.mxu0 %v476
    %526 = vmatprep.subr.bf16.mxu0 0
    %527 = vmatpush2.bf16.msra.mxu0 %v475
    %528 = vmatprep.subr.bf16.mxu0 0
    %529 = vmatpush2.bf16.msra.mxu0 %v474
    %530 = vmatprep.mubr.bf16.mxu0 %v362
    %531 = vmatmul.mubr.bf16.gmra.mxu0 %v361
    %v532 = vpop.f32.mrf.mxu0
    %v533 = vadd.f32 %v400, %v532
    %v534 = vpop.f32.mrf.mxu0
    %v535 = vpop.f32.mrf.mxu0
    %v536 = vpop.f32.mrf.mxu0
    %537 = vdwg.mxu0
    %538 = vst [vmem:[%s7] sm:$0xff] %v533
    // Predicated region
    $region38: #{qnet_forward.1} parent=1 // pred_check
      _
    $region39: #{qnet_forward.1} parent=1 // pred_check_branch
      %540 = sbr.rel (0) target = $region41
    $region40: #{qnet_forward.1} parent=1 // pred_region
      _
    $region41: #{qnet_forward.1} parent=1 // pred_fallthru
      _
    // Predicated region
    $region42: #{qnet_forward.1} parent=1 // pred_check
      _
    $region43: #{qnet_forward.1} parent=1 // pred_check_branch
      %542 = sbr.rel (0) target = $region45
    $region44: #{qnet_forward.1} parent=1 // pred_region
      _
    $region45: #{qnet_forward.1} parent=1 // pred_fallthru
      _
    %543 = vsyncpa [#allocation3], 1
    %544 = vsyncpa [#allocation5], 1

</llo_original>
